<compile_context>
chip_gen: v5e
topology: v5e:2x2
jax: 0.10.0
libtpu: 0.0.40
codegen_flags: <defaults>
</compile_context>

<pallas_src>
import functools
import math

import numpy as np

import jax
import jax.numpy as jnp
from jax.experimental import pallas as pl
from jax.experimental.pallas import tpu as pltpu


# --------------------------------------------------------------------------- #
# small host-side helpers (static-shape constants)
# --------------------------------------------------------------------------- #
def _relative_position_index(ws: int) -> np.ndarray:
    """Standard Swin relative-position index, (N, N) with N = ws*ws."""
    coords = np.stack(np.meshgrid(np.arange(ws), np.arange(ws), indexing="ij"))
    cf = coords.reshape(2, -1)                              # (2, N)
    rel = cf[:, :, None] - cf[:, None, :]                   # (2, N, N)
    rel = rel.transpose(1, 2, 0).astype(np.int64)           # (N, N, 2)
    rel[:, :, 0] += ws - 1
    rel[:, :, 1] += ws - 1
    rel[:, :, 0] *= 2 * ws - 1
    return rel.sum(-1)                                      # (N, N)


def _shift_attn_mask(H: int, W: int, ws: int, ss: int) -> np.ndarray:
    """attn_mask2 of the PyTorch block: (nW, N, N) with 0 / -100 entries."""
    img = np.zeros((H, W), np.float32)
    cnt = 0
    for hs in (slice(0, -ws), slice(-ws, -ss), slice(-ss, None)):
        for wsl in (slice(0, -ws), slice(-ws, -ss), slice(-ss, None)):
            img[hs, wsl] = cnt
            cnt += 1
    mw = (img.reshape(H // ws, ws, W // ws, ws)
             .transpose(0, 2, 1, 3).reshape(-1, ws * ws))   # (nW, N)
    diff = mw[:, None, :] - mw[:, :, None]                  # (nW, N, N)
    return np.where(diff != 0, -100.0, 0.0).astype(np.float32)


def make_config(dim, input_resolution, num_heads, window_size=7, mlp_ratio=4.0):
    """Replicates the window/shift adjustment logic of the module __init__."""
    ws = window_size
    ss = ws // 2
    if min(input_resolution) <= ws:
        ss = 0
        ws = min(input_resolution)
    assert 0 <= ss < ws, "shift_size must in 0-window_size"
    H, W = input_resolution
    assert H % ws == 0 and W % ws == 0, "resolution must be divisible by window"
    return dict(dim=dim, input_resolution=input_resolution, num_heads=num_heads,
                window_size=ws, shift_size=ss, mlp_ratio=mlp_ratio)


def _pick_window_tile(nw: int, cap: int = 8) -> int:
    """Largest divisor of nW that is <= cap (windows processed per K2 step)."""
    wt = 1
    for d in range(1, nw + 1):
        if nw % d == 0 and d <= cap:
            wt = d
    return wt


# --------------------------------------------------------------------------- #
# in-kernel math helpers
# --------------------------------------------------------------------------- #
def _gelu_tanh(x):
    # tanh-approximate GELU: goes to the EUP slot instead of ~10 VALU ops.
    c = 0.7978845608028654                                   # sqrt(2/pi)
    return 0.5 * x * (1.0 + jnp.tanh(c * (x + 0.044715 * x * x * x)))


# --------------------------------------------------------------------------- #
# Pallas kernels
# --------------------------------------------------------------------------- #
def _adain_qkv_kernel(x_ref, style_ref, wg_ref, bg_ref, wb_ref, bb_ref,
                      wqkv_ref, bqkv_ref, o_ref):
    """AdaIN(norm1, style) followed by the fused QKV projection (one batch)."""
    x = x_ref[0]                                             # (L, C) f32
    st = style_ref[0]                                        # (1, S) f32

    gamma = jnp.dot(st, wg_ref[...], preferred_element_type=jnp.float32) + bg_ref[...]
    beta = jnp.dot(st, wb_ref[...], preferred_element_type=jnp.float32) + bb_ref[...]

    # InstanceNorm1d over tokens (per channel), two-pass variance, eps = 1e-5.
    mean = jnp.mean(x, axis=0, keepdims=True)                # (1, C)
    xc = x - mean
    var = jnp.mean(xc * xc, axis=0, keepdims=True)
    xn = xc * jax.lax.rsqrt(var + 1e-5) * gamma + beta

    # bf16 MXU operands, f32 accumulation (q-scale already folded into weights).
    qkv = jnp.dot(xn.astype(wqkv_ref.dtype), wqkv_ref[...],
                  preferred_element_type=jnp.float32) + bqkv_ref[...]
    o_ref[0] = qkv.astype(o_ref.dtype)


def _window_attn_kernel(q_ref, k_ref, v_ref, rpb_ref, mask_ref, o_ref):
    """Both dual-attention branches, all heads, wt windows in one batched step.

    q/k/v blocks: (1, 2*nh2, wt, N, hd) bf16, ordered (branch, head, window).
    rpb : (2*nh2, N, N) f32 (VMEM resident), mask : (2, wt, N, N) f32.
    """
    _, two_nh, wt, n, hd = q_ref.shape
    nh2 = two_nh // 2
    g = two_nh * wt

    q = q_ref[0].reshape(g, n, hd)                           # bf16
    k = k_ref[0].reshape(g, n, hd)
    v = v_ref[0].reshape(g, n, hd)

    s = jnp.einsum("gnd,gmd->gnm", q, k,
                   preferred_element_type=jnp.float32)       # (g, N, N) f32

    # broadcast-add small bias operands (no dense (nW, h, N, N) array in HBM)
    s = s.reshape(2, nh2, wt, n, n)
    s = s + rpb_ref[...].reshape(2, nh2, 1, n, n)            # rel-pos bias per head
    s = s + mask_ref[...].reshape(2, 1, wt, n, n)            # shift mask per window
    s = s.reshape(g, n, n)

    m = jnp.max(s, axis=-1, keepdims=True)
    p = jnp.exp(s - m)
    l = jnp.sum(p, axis=-1, keepdims=True)
    p = p * pl.reciprocal(l, approx=True)                    # EUP divide

    o = jnp.einsum("gnm,gmd->gnd", p.astype(v.dtype), v,
                   preferred_element_type=jnp.float32)       # (g, N, hd)
    o_ref[0] = o.reshape(two_nh, wt, n, hd).astype(o_ref.dtype)


def _proj_adain_mlp_kernel(attn_ref, short_ref, style_ref,
                           wproj_ref, bproj_ref,
                           wg_ref, bg_ref, wb_ref, bb_ref,
                           wfc1_ref, bfc1_ref, wfc2_ref, bfc2_ref, o_ref):
    """proj + residual + AdaIN(norm2, style) + MLP(tanh-GELU) + residual."""
    a = attn_ref[0]                                          # (L, C) bf16
    proj = jnp.dot(a, wproj_ref[...],
                   preferred_element_type=jnp.float32) + bproj_ref[...]
    x = short_ref[0] + proj                                  # f32 residual

    st = style_ref[0]                                        # (1, S) f32
    gamma = jnp.dot(st, wg_ref[...], preferred_element_type=jnp.float32) + bg_ref[...]
    beta = jnp.dot(st, wb_ref[...], preferred_element_type=jnp.float32) + bb_ref[...]

    mean = jnp.mean(x, axis=0, keepdims=True)
    xc = x - mean
    var = jnp.mean(xc * xc, axis=0, keepdims=True)
    xn = xc * jax.lax.rsqrt(var + 1e-5) * gamma + beta

    h = jnp.dot(xn.astype(wfc1_ref.dtype), wfc1_ref[...],
                preferred_element_type=jnp.float32) + bfc1_ref[...]
    h = _gelu_tanh(h)
    y = jnp.dot(h.astype(wfc2_ref.dtype), wfc2_ref[...],
                preferred_element_type=jnp.float32) + bfc2_ref[...]

    o_ref[0] = (x + y).astype(o_ref.dtype)


# --------------------------------------------------------------------------- #
# wrapper: full StyleSwinTransformerBlock forward
# --------------------------------------------------------------------------- #
def style_swin_block(x, style, params, cfg):
    """x: (B, H*W, dim), style: (B, style_dim) -> (B, H*W, dim)."""
    f32 = jnp.float32
    bf16 = jnp.bfloat16
    H, W = cfg["input_resolution"]
    C = cfg["dim"]
    nh = cfg["num_heads"]
    ws = cfg["window_size"]
    ss = cfg["shift_size"]
    B, L, _ = x.shape
    assert L == H * W, "input feature has wrong size"
    S = style.shape[-1]
    Ch = C // 2
    nh2 = nh // 2
    hd = Ch // nh2
    N = ws * ws
    Hn, Wn = H // ws, W // ws
    nW = Hn * Wn
    Hm = int(C * cfg["mlp_ratio"])
    eq_scale = 1.0 / math.sqrt(S)                            # EqualLinear scale (lr_mul=1)
    qk_scale = hd ** -0.5

    x = x.astype(f32)
    style3 = style.astype(f32).reshape(B, 1, S)

    # ---- parameter preprocessing (tiny, static-shape) ------------------------
    def split_style(w, b):
        w = (w.astype(f32) * eq_scale)
        return (w[:C].T, b[:C].reshape(1, C).astype(f32),
                w[C:].T, b[C:].reshape(1, C).astype(f32))

    w_g1, b_g1, w_b1, b_b1 = split_style(params["style1_w"], params["style1_b"])
    w_g2, b_g2, w_b2, b_b2 = split_style(params["style2_w"], params["style2_b"])

    # fold the 1/sqrt(hd) query scale into the Q third of the QKV weight / bias
    col_scale = np.concatenate([np.full(C, qk_scale, np.float32),
                                np.ones(2 * C, np.float32)])
    w_qkv_t = (params["qkv_w"].T.astype(f32) * col_scale[None, :]).astype(bf16)
    b_qkv = (params["qkv_b"].astype(f32) * col_scale).reshape(1, 3 * C)
    w_proj_t = params["proj_w"].T.astype(bf16)               # (C, C)
    b_proj = params["proj_b"].reshape(1, C).astype(f32)
    w_fc1_t = params["fc1_w"].T.astype(bf16)                 # (C, Hm)
    b_fc1 = params["fc1_b"].reshape(1, Hm).astype(f32)
    w_fc2_t = params["fc2_w"].T.astype(bf16)                 # (Hm, C)
    b_fc2 = params["fc2_b"].reshape(1, C).astype(f32)

    cp1 = pltpu.CompilerParams(dimension_semantics=("parallel",),
                               vmem_limit_bytes=48 * 1024 * 1024)

    # ---------------- K1: AdaIN(norm1) + QKV projection ----------------------
    qkv = pl.pallas_call(
        _adain_qkv_kernel,
        out_shape=jax.ShapeDtypeStruct((B, L, 3 * C), bf16),
        grid_spec=pltpu.PrefetchScalarGridSpec(
            num_scalar_prefetch=0, grid=(B,),
            in_specs=[
                pl.BlockSpec((1, L, C), lambda b: (b, 0, 0)),
                pl.BlockSpec((1, 1, S), lambda b: (b, 0, 0)),
                pl.BlockSpec((S, C), lambda b: (0, 0)),
                pl.BlockSpec((1, C), lambda b: (0, 0)),
                pl.BlockSpec((S, C), lambda b: (0, 0)),
                pl.BlockSpec((1, C), lambda b: (0, 0)),
                pl.BlockSpec((C, 3 * C), lambda b: (0, 0)),
                pl.BlockSpec((1, 3 * C), lambda b: (0, 0)),
            ],
            out_specs=pl.BlockSpec((1, L, 3 * C), lambda b: (b, 0, 0)),
        ),
        compiler_params=cp1,
    )(x, style3, w_g1, b_g1, w_b1, b_b1, w_qkv_t, b_qkv)

    # ---------------- layout plumbing: split / shift / window partition ------
    qkv = qkv.reshape(B, H, W, 3, C).transpose(3, 0, 1, 2, 4)   # (3, B, H, W, C) bf16
    qkv1 = qkv[..., :Ch]
    qkv2 = qkv[..., Ch:]
    if ss > 0:
        qkv2 = jnp.roll(qkv2, shift=(-ss, -ss), axis=(2, 3))

    def wpart(t):
        # (B, H, W, Ch) -> (B, nh2, nW, N, hd); windows (Hn, Wn)-major,
        # in-window tokens row-major, heads split from channels.
        t = t.reshape(B, Hn, ws, Wn, ws, nh2, hd)
        t = t.transpose(0, 5, 1, 3, 2, 4, 6)
        return t.reshape(B, nh2, nW, N, hd)

    # branch axis first, then heads: (B, 2*nh2, nW, N, hd), bf16
    q = jnp.concatenate([wpart(qkv1[0]), wpart(qkv2[0])], axis=1)
    k = jnp.concatenate([wpart(qkv1[1]), wpart(qkv2[1])], axis=1)
    v = jnp.concatenate([wpart(qkv1[2]), wpart(qkv2[2])], axis=1)

    # small bias operands (no dense (nW, h, N, N) array)
    rel_idx = _relative_position_index(ws).reshape(-1)          # numpy (N*N,)

    def rpb(table):
        b = jnp.asarray(table, f32)[rel_idx].reshape(N, N, nh2)
        return b.transpose(2, 0, 1)                              # (nh2, N, N)

    rpb_all = jnp.concatenate([rpb(params["rpb_table1"]),
                               rpb(params["rpb_table2"])], axis=0)  # (2*nh2, N, N)
    mask2 = (_shift_attn_mask(H, W, ws, ss) if ss > 0
             else np.zeros((nW, N, N), np.float32))
    mask_all = jnp.asarray(np.stack([np.zeros_like(mask2), mask2], axis=0))  # (2,nW,N,N)

    # ---------------- K2: dual-branch batched window attention ----------------
    wt = _pick_window_tile(nW, cap=8)
    n_wt = nW // wt
    qkv_blk = (1, 2 * nh2, wt, N, hd)

    attn_out = pl.pallas_call(
        _window_attn_kernel,
        out_shape=jax.ShapeDtypeStruct((B, 2 * nh2, nW, N, hd), bf16),
        grid_spec=pltpu.PrefetchScalarGridSpec(
            num_scalar_prefetch=0, grid=(n_wt, B),
            in_specs=[
                pl.BlockSpec(qkv_blk, lambda t, b: (b, 0, t, 0, 0)),
                pl.BlockSpec(qkv_blk, lambda t, b: (b, 0, t, 0, 0)),
                pl.BlockSpec(qkv_blk, lambda t, b: (b, 0, t, 0, 0)),
                pl.BlockSpec((2 * nh2, N, N), lambda t, b: (0, 0, 0)),   # resident
                pl.BlockSpec((2, wt, N, N), lambda t, b: (0, t, 0, 0)),  # fixed over b
            ],
            out_specs=pl.BlockSpec(qkv_blk, lambda t, b: (b, 0, t, 0, 0)),
        ),
        compiler_params=pltpu.CompilerParams(
            dimension_semantics=("parallel", "parallel"),
            vmem_limit_bytes=48 * 1024 * 1024),
    )(q, k, v, rpb_all, mask_all)

    # ---------------- layout plumbing: window reverse + un-shift + concat -----
    img = attn_out.reshape(B, 2, nh2, Hn, Wn, ws, ws, hd)
    img = img.transpose(0, 1, 3, 5, 4, 6, 2, 7).reshape(B, 2, H, W, Ch)  # bf16
    x1 = img[:, 0]
    x2 = img[:, 1]
    if ss > 0:
        x2 = jnp.roll(x2, shift=(ss, ss), axis=(1, 2))
    attn_cat = jnp.concatenate([x1.reshape(B, L, Ch), x2.reshape(B, L, Ch)],
                               axis=-1)                          # (B, L, C) bf16

    # ---------------- K3: proj + residual + AdaIN(norm2) + MLP + residual ----
    out = pl.pallas_call(
        _proj_adain_mlp_kernel,
        out_shape=jax.ShapeDtypeStruct((B, L, C), f32),
        grid_spec=pltpu.PrefetchScalarGridSpec(
            num_scalar_prefetch=0, grid=(B,),
            in_specs=[
                pl.BlockSpec((1, L, C), lambda b: (b, 0, 0)),   # attention output (bf16)
                pl.BlockSpec((1, L, C), lambda b: (b, 0, 0)),   # shortcut (f32)
                pl.BlockSpec((1, 1, S), lambda b: (b, 0, 0)),   # style
                pl.BlockSpec((C, C), lambda b: (0, 0)),
                pl.BlockSpec((1, C), lambda b: (0, 0)),
                pl.BlockSpec((S, C), lambda b: (0, 0)),
                pl.BlockSpec((1, C), lambda b: (0, 0)),
                pl.BlockSpec((S, C), lambda b: (0, 0)),
                pl.BlockSpec((1, C), lambda b: (0, 0)),
                pl.BlockSpec((C, Hm), lambda b: (0, 0)),
                pl.BlockSpec((1, Hm), lambda b: (0, 0)),
                pl.BlockSpec((Hm, C), lambda b: (0, 0)),
                pl.BlockSpec((1, C), lambda b: (0, 0)),
            ],
            out_specs=pl.BlockSpec((1, L, C), lambda b: (b, 0, 0)),
        ),
        compiler_params=cp1,
    )(attn_cat, x, style3, w_proj_t, b_proj,
      w_g2, b_g2, w_b2, b_b2, w_fc1_t, b_fc1, w_fc2_t, b_fc2)
    return out


# --------------------------------------------------------------------------- #
# pure-JAX f32 reference of the PyTorch forward (exact-erf GELU, f32 weights)
# --------------------------------------------------------------------------- #
def _reference(x, style, params, cfg):
    H, W = cfg["input_resolution"]
    C = cfg["dim"]
    nh = cfg["num_heads"]
    ws = cfg["window_size"]
    ss = cfg["shift_size"]
    B, L, _ = x.shape
    S = style.shape[-1]
    Ch = C // 2
    nh2 = nh // 2
    hd = Ch // nh2
    N = ws * ws
    nW = (H // ws) * (W // ws)
    eq_scale = 1.0 / math.sqrt(S)
    x = x.astype(jnp.float32)
    style = style.astype(jnp.float32)

    def adain(xin, w, b):
        st = style @ (w * eq_scale).T + b                     # (B, 2C)
        g, bb = st[:, :C], st[:, C:]
        mean = xin.mean(axis=1, keepdims=True)
        var = ((xin - mean) ** 2).mean(axis=1, keepdims=True)
        xn = (xin - mean) / jnp.sqrt(var + 1e-5)
        return xn * g[:, None, :] + bb[:, None, :]

    shortcut = x
    xn = adain(x, params["style1_w"], params["style1_b"])
    qkv = xn @ params["qkv_w"].T + params["qkv_b"]
    qkv = qkv.reshape(B, L, 3, C).transpose(2, 0, 1, 3).reshape(3, B, H, W, C)
    qkv1 = qkv[..., :Ch]
    qkv2 = qkv[..., Ch:]
    if ss > 0:
        qkv2 = jnp.roll(qkv2, shift=(-ss, -ss), axis=(2, 3))

    rel_idx = _relative_position_index(ws).reshape(-1)

    def branch(qkv_h, table, mask):
        def wpart(t):
            return (t.reshape(B, H // ws, ws, W // ws, ws, Ch)
                     .transpose(0, 1, 3, 2, 4, 5).reshape(-1, N, Ch))
        q, k, v = wpart(qkv_h[0]), wpart(qkv_h[1]), wpart(qkv_h[2])
        B_ = q.shape[0]

        def heads(t):
            return t.reshape(B_, N, nh2, hd).transpose(0, 2, 1, 3)

        qh = heads(q) * (hd ** -0.5)
        kh, vh = heads(k), heads(v)
        attn = jnp.einsum("bhnd,bhmd->bhnm", qh, kh)
        bias = jnp.asarray(table)[rel_idx].reshape(N, N, nh2).transpose(2, 0, 1)
        attn = attn + bias[None]
        if mask is not None:
            attn = attn.reshape(B, nW, nh2, N, N) + mask[None, :, None]
            attn = attn.reshape(B_, nh2, N, N)
        attn = jax.nn.softmax(attn, axis=-1)
        out = jnp.einsum("bhnm,bhmd->bhnd", attn, vh)
        out = out.transpose(0, 2, 1, 3).reshape(B_, N, Ch)
        out = (out.reshape(B, H // ws, W // ws, ws, ws, Ch)
                  .transpose(0, 1, 3, 2, 4, 5).reshape(B, H, W, Ch))
        return out

    x1 = branch(qkv1, params["rpb_table1"], None)
    mask2 = jnp.asarray(_shift_attn_mask(H, W, ws, ss)) if ss > 0 else None
    x2 = branch(qkv2, params["rpb_table2"], mask2)
    if ss > 0:
        x2 = jnp.roll(x2, shift=(ss, ss), axis=(1, 2))
    xa = jnp.concatenate([x1.reshape(B, L, Ch), x2.reshape(B, L, Ch)], axis=-1)
    xr = shortcut + (xa @ params["proj_w"].T + params["proj_b"])
    xn2 = adain(xr, params["style2_w"], params["style2_b"])
    h = jax.nn.gelu(xn2 @ params["fc1_w"].T + params["fc1_b"], approximate=False)
    y = h @ params["fc2_w"].T + params["fc2_b"]
    return xr + y


# --------------------------------------------------------------------------- #
# main
# --------------------------------------------------------------------------- #
if __name__ == "__main__":
    B = 2
    H = W = 16
    dim = 32
    num_heads = 4
    style_dim = 64
    mlp_ratio = 4.0

    cfg = make_config(dim, (H, W), num_heads, window_size=8, mlp_ratio=mlp_ratio)
    ws = cfg["window_size"]
    nh2 = num_heads // 2
    Hm = int(dim * mlp_ratio)

    key = jax.random.PRNGKey(0)
    ks = jax.random.split(key, 16)
    nrm = jax.random.normal

    params = {
        # AdaIN 1 (EqualLinear style -> 2*dim); bias init: gamma part 1, beta part 0
        "style1_w": 0.05 * nrm(ks[0], (2 * dim, style_dim), jnp.float32),
        "style1_b": jnp.concatenate([jnp.ones((dim,), jnp.float32),
                                     jnp.zeros((dim,), jnp.float32)]),
        # qkv / proj
        "qkv_w": 0.05 * nrm(ks[1], (3 * dim, dim), jnp.float32),
        "qkv_b": 0.05 * nrm(ks[2], (3 * dim,), jnp.float32),
        "proj_w": 0.05 * nrm(ks[3], (dim, dim), jnp.float32),
        "proj_b": 0.05 * nrm(ks[4], (dim,), jnp.float32),
        # relative-position-bias tables (one per dual-attention branch)
        "rpb_table1": 0.05 * nrm(ks[5], ((2 * ws - 1) ** 2, nh2), jnp.float32),
        "rpb_table2": 0.05 * nrm(ks[6], ((2 * ws - 1) ** 2, nh2), jnp.float32),
        # AdaIN 2
        "style2_w": 0.05 * nrm(ks[7], (2 * dim, style_dim), jnp.float32),
        "style2_b": jnp.concatenate([jnp.ones((dim,), jnp.float32),
                                     jnp.zeros((dim,), jnp.float32)]),
        # MLP
        "fc1_w": 0.05 * nrm(ks[8], (Hm, dim), jnp.float32),
        "fc1_b": 0.05 * nrm(ks[9], (Hm,), jnp.float32),
        "fc2_w": 0.05 * nrm(ks[10], (dim, Hm), jnp.float32),
        "fc2_b": 0.05 * nrm(ks[11], (dim,), jnp.float32),
    }

    x = nrm(ks[12], (B, H * W, dim), jnp.float32)
    style = nrm(ks[13], (B, style_dim), jnp.float32)

    out = style_swin_block(x, style, params, cfg)
    out = jax.block_until_ready(out)
    assert out.shape == (B, H * W, dim), out.shape

    ref = _reference(x, style, params, cfg)
    # bf16 MXU operands + tanh-GELU vs f32 / exact-erf reference -> relaxed tol.
    max_diff = float(jnp.max(jnp.abs(out - ref)))
    assert jnp.allclose(out, ref, atol=2e-2, rtol=2e-2), \
        f"mismatch vs reference, max abs diff {max_diff}"

    print("KERNEL_OK")
</pallas_src>

<mosaic_0001>
module attributes {stable_mosaic.version = 11 : i64} {
  func.func @_adain_qkv_kernel(%arg0: i32, %arg1: memref<1x256x32xf32, #tpu.memory_space<vmem>>, %arg2: memref<1x1x64xf32, #tpu.memory_space<vmem>>, %arg3: memref<64x32xf32, #tpu.memory_space<vmem>>, %arg4: memref<1x32xf32, #tpu.memory_space<vmem>>, %arg5: memref<64x32xf32, #tpu.memory_space<vmem>>, %arg6: memref<1x32xf32, #tpu.memory_space<vmem>>, %arg7: memref<32x96xbf16, #tpu.memory_space<vmem>>, %arg8: memref<1x96xf32, #tpu.memory_space<vmem>>, %arg9: memref<1x256x96xbf16, #tpu.memory_space<vmem>>) attributes {dimension_semantics = [#tpu.dimension_semantics<parallel>], iteration_bounds = array<i64: 2>, scalar_prefetch = 0 : i64, scratch_operands = 0 : i64, tpu.core_type = #tpu.core_type<tc>, window_params = [{transform_indices = @transform_0, window_bounds = array<i64: 1, 256, 32>}, {transform_indices = @transform_1, window_bounds = array<i64: 1, 1, 64>}, {pipeline_mode = #tpu.pipeline_mode<synchronous>, transform_indices = @transform_2, window_bounds = array<i64: 64, 32>}, {pipeline_mode = #tpu.pipeline_mode<synchronous>, transform_indices = @transform_3, window_bounds = array<i64: 1, 32>}, {pipeline_mode = #tpu.pipeline_mode<synchronous>, transform_indices = @transform_4, window_bounds = array<i64: 64, 32>}, {pipeline_mode = #tpu.pipeline_mode<synchronous>, transform_indices = @transform_5, window_bounds = array<i64: 1, 32>}, {pipeline_mode = #tpu.pipeline_mode<synchronous>, transform_indices = @transform_6, window_bounds = array<i64: 32, 96>}, {pipeline_mode = #tpu.pipeline_mode<synchronous>, transform_indices = @transform_7, window_bounds = array<i64: 1, 96>}, {transform_indices = @transform_8, window_bounds = array<i64: 1, 256, 96>}]} {
    %c0 = arith.constant 0 : index
    %c0_0 = arith.constant 0 : index
    %c0_1 = arith.constant 0 : index
    %0 = vector.load %arg1[%c0, %c0_0, %c0_1] : memref<1x256x32xf32, #tpu.memory_space<vmem>>, vector<1x256x32xf32>
    %1 = vector.shape_cast %0 : vector<1x256x32xf32> to vector<256x32xf32>
    %c0_2 = arith.constant 0 : index
    %c0_3 = arith.constant 0 : index
    %c0_4 = arith.constant 0 : index
    %2 = vector.load %arg2[%c0_2, %c0_3, %c0_4] : memref<1x1x64xf32, #tpu.memory_space<vmem>>, vector<1x1x64xf32>
    %3 = vector.shape_cast %2 : vector<1x1x64xf32> to vector<1x64xf32>
    %c0_5 = arith.constant 0 : index
    %c0_6 = arith.constant 0 : index
    %4 = vector.load %arg3[%c0_5, %c0_6] : memref<64x32xf32, #tpu.memory_space<vmem>>, vector<64x32xf32>
    %cst = arith.constant dense<0.000000e+00> : vector<1x32xf32>
    %5 = tpu.matmul %3, %4, %cst {dimension_numbers = #tpu.dot_dimension_numbers<[1], [0], [0], [1], [0, 0, 1, 1], [], []>} : vector<1x64xf32>, vector<64x32xf32>, vector<1x32xf32> -> vector<1x32xf32>
    %c0_7 = arith.constant 0 : index
    %c0_8 = arith.constant 0 : index
    %6 = vector.load %arg4[%c0_7, %c0_8] : memref<1x32xf32, #tpu.memory_space<vmem>>, vector<1x32xf32>
    %7 = arith.addf %5, %6 : vector<1x32xf32>
    %c0_9 = arith.constant 0 : index
    %c0_10 = arith.constant 0 : index
    %8 = vector.load %arg5[%c0_9, %c0_10] : memref<64x32xf32, #tpu.memory_space<vmem>>, vector<64x32xf32>
    %cst_11 = arith.constant dense<0.000000e+00> : vector<1x32xf32>
    %9 = tpu.matmul %3, %8, %cst_11 {dimension_numbers = #tpu.dot_dimension_numbers<[1], [0], [0], [1], [0, 0, 1, 1], [], []>} : vector<1x64xf32>, vector<64x32xf32>, vector<1x32xf32> -> vector<1x32xf32>
    %c0_12 = arith.constant 0 : index
    %c0_13 = arith.constant 0 : index
    %10 = vector.load %arg6[%c0_12, %c0_13] : memref<1x32xf32, #tpu.memory_space<vmem>>, vector<1x32xf32>
    %11 = arith.addf %9, %10 : vector<1x32xf32>
    %cst_14 = arith.constant dense<0.000000e+00> : vector<32xf32>
    %12 = vector.multi_reduction <add>, %1, %cst_14 [0] : vector<256x32xf32> to vector<32xf32>
    %13 = vector.shape_cast %12 : vector<32xf32> to vector<1x32xf32>
    %cst_15 = arith.constant 2.560000e+02 : f32
    %14 = vector.broadcast %cst_15 : f32 to vector<1x32xf32>
    %15 = arith.divf %13, %14 : vector<1x32xf32>
    %16 = vector.broadcast %15 : vector<1x32xf32> to vector<256x32xf32>
    %17 = arith.subf %1, %16 : vector<256x32xf32>
    %18 = arith.mulf %17, %17 : vector<256x32xf32>
    %cst_16 = arith.constant dense<0.000000e+00> : vector<32xf32>
    %19 = vector.multi_reduction <add>, %18, %cst_16 [0] : vector<256x32xf32> to vector<32xf32>
    %20 = vector.shape_cast %19 : vector<32xf32> to vector<1x32xf32>
    %cst_17 = arith.constant 2.560000e+02 : f32
    %21 = vector.broadcast %cst_17 : f32 to vector<1x32xf32>
    %22 = arith.divf %20, %21 : vector<1x32xf32>
    %cst_18 = arith.constant 9.99999974E-6 : f32
    %23 = vector.broadcast %cst_18 : f32 to vector<1x32xf32>
    %24 = arith.addf %22, %23 : vector<1x32xf32>
    %25 = math.rsqrt %24 : vector<1x32xf32>
    %26 = vector.broadcast %25 : vector<1x32xf32> to vector<256x32xf32>
    %27 = arith.mulf %17, %26 : vector<256x32xf32>
    %28 = vector.broadcast %7 : vector<1x32xf32> to vector<256x32xf32>
    %29 = arith.mulf %27, %28 : vector<256x32xf32>
    %30 = vector.broadcast %11 : vector<1x32xf32> to vector<256x32xf32>
    %31 = arith.addf %29, %30 : vector<256x32xf32>
    %32 = arith.truncf %31 : vector<256x32xf32> to vector<256x32xbf16>
    %c0_19 = arith.constant 0 : index
    %c0_20 = arith.constant 0 : index
    %33 = vector.load %arg7[%c0_19, %c0_20] : memref<32x96xbf16, #tpu.memory_space<vmem>>, vector<32x96xbf16>
    %cst_21 = arith.constant dense<0.000000e+00> : vector<256x96xf32>
    %34 = tpu.matmul %32, %33, %cst_21 {dimension_numbers = #tpu.dot_dimension_numbers<[1], [0], [0], [1], [0, 0, 1, 1], [], []>} : vector<256x32xbf16>, vector<32x96xbf16>, vector<256x96xf32> -> vector<256x96xf32>
    %c0_22 = arith.constant 0 : index
    %c0_23 = arith.constant 0 : index
    %35 = vector.load %arg8[%c0_22, %c0_23] : memref<1x96xf32, #tpu.memory_space<vmem>>, vector<1x96xf32>
    %36 = vector.broadcast %35 : vector<1x96xf32> to vector<256x96xf32>
    %37 = arith.addf %34, %36 : vector<256x96xf32>
    %38 = arith.truncf %37 : vector<256x96xf32> to vector<256x96xbf16>
    %c0_24 = arith.constant 0 : index
    %c0_25 = arith.constant 0 : index
    %c0_26 = arith.constant 0 : index
    %39 = vector.load %arg9[%c0_24, %c0_25, %c0_26] : memref<1x256x96xbf16, #tpu.memory_space<vmem>>, vector<1x256x96xbf16>
    %40 = vector.shape_cast %39 : vector<1x256x96xbf16> to vector<256x96xbf16>
    %41 = vector.shape_cast %38 : vector<256x96xbf16> to vector<1x256x96xbf16>
    tpu.vector_store %arg9[%c0_24, %c0_25, %c0_26], %41 {strides = array<i32>} : memref<1x256x96xbf16, #tpu.memory_space<vmem>>, vector<1x256x96xbf16>,
    return
  }
  func.func @transform_0(%arg0: i32) -> (i32, i32, i32) {
    %c0_i32 = arith.constant 0 : i32
    %c0_i32_0 = arith.constant 0 : i32
    %c0_i32_1 = arith.constant 0 : i32
    return %arg0, %c0_i32, %c0_i32_0 : i32, i32, i32
  }
  func.func @transform_1(%arg0: i32) -> (i32, i32, i32) {
    %c0_i32 = arith.constant 0 : i32
    %c0_i32_0 = arith.constant 0 : i32
    %c0_i32_1 = arith.constant 0 : i32
    return %arg0, %c0_i32, %c0_i32_0 : i32, i32, i32
  }
  func.func @transform_2(%arg0: i32) -> (i32, i32) {
    %c0_i32 = arith.constant 0 : i32
    %c0_i32_0 = arith.constant 0 : i32
    %c0_i32_1 = arith.constant 0 : i32
    return %c0_i32, %c0_i32_0 : i32, i32
  }
  func.func @transform_3(%arg0: i32) -> (i32, i32) {
    %c0_i32 = arith.constant 0 : i32
    %c0_i32_0 = arith.constant 0 : i32
    %c0_i32_1 = arith.constant 0 : i32
    return %c0_i32, %c0_i32_0 : i32, i32
  }
  func.func @transform_4(%arg0: i32) -> (i32, i32) {
    %c0_i32 = arith.constant 0 : i32
    %c0_i32_0 = arith.constant 0 : i32
    %c0_i32_1 = arith.constant 0 : i32
    return %c0_i32, %c0_i32_0 : i32, i32
  }
  func.func @transform_5(%arg0: i32) -> (i32, i32) {
    %c0_i32 = arith.constant 0 : i32
    %c0_i32_0 = arith.constant 0 : i32
    %c0_i32_1 = arith.constant 0 : i32
    return %c0_i32, %c0_i32_0 : i32, i32
  }
  func.func @transform_6(%arg0: i32) -> (i32, i32) {
    %c0_i32 = arith.constant 0 : i32
    %c0_i32_0 = arith.constant 0 : i32
    %c0_i32_1 = arith.constant 0 : i32
    return %c0_i32, %c0_i32_0 : i32, i32
  }
  func.func @transform_7(%arg0: i32) -> (i32, i32) {
    %c0_i32 = arith.constant 0 : i32
    %c0_i32_0 = arith.constant 0 : i32
    %c0_i32_1 = arith.constant 0 : i32
    return %c0_i32, %c0_i32_0 : i32, i32
  }
  func.func @transform_8(%arg0: i32) -> (i32, i32, i32) {
    %c0_i32 = arith.constant 0 : i32
    %c0_i32_0 = arith.constant 0 : i32
    %c0_i32_1 = arith.constant 0 : i32
    return %arg0, %c0_i32, %c0_i32_0 : i32, i32, i32
  }
}

</mosaic_0001>

<llo_original>
// kernel: tpu_custom_call.1
$region0: #{tpu_custom_call.1}
  #allocation0 [shape = 'u32[]', space=smem, size = 0x4, offset = 0x4, fixed_abs, tag = 'smem constant byte address 0x4 - core index']
  #allocation1 [shape = 'u32[72,128]{1,0:T(1,128)}', space=vmem, size = 0x9000, scoped, tag = 'internal scratch']
  %s0 = inlined_call_operand.vmem [shape: f32[2,256,32], index: 0, kind: input, shape index: {}]
  %s1 = inlined_call_operand.vmem [shape: f32[2,1,64], index: 1, kind: input, shape index: {}]
  %s2 = inlined_call_operand.vmem [shape: f32[64,32], index: 2, kind: input, shape index: {}]
  %s3 = inlined_call_operand.vmem [shape: f32[1,32], index: 3, kind: input, shape index: {}]
  %s4 = inlined_call_operand.vmem [shape: f32[64,32], index: 4, kind: input, shape index: {}]
  %s5 = inlined_call_operand.vmem [shape: f32[1,32], index: 5, kind: input, shape index: {}]
  %s6 = inlined_call_operand.vmem [shape: bf16[32,96], index: 6, kind: input, shape index: {}]
  %s7 = inlined_call_operand.vmem [shape: f32[1,96], index: 7, kind: input, shape index: {}]
  %s8 = inlined_call_operand.vmem [shape: bf16[2,256,96], index: 8, kind: output, shape index: {}]
  %s9 = sld [smem:[#allocation0]]
  $region65: #{tpu_custom_call.1} parent=0
    _
  %s11 = ssub.s32 1, %s9
  %s12 = scalar_select 0, %s11, %s9
  loop: start=0, step=1, limit=4
  $region2: #{tpu_custom_call.1} parent=0 // loop_pre_header
    _
  $region3: #{tpu_custom_call.1} parent=0 // loop_header
    %s14 = sphi 0, %s18
    %p15 = scmp.ge.s32.totalorder %s14, 4
    %s24 = sphi 0, %s26
    %s27 = sphi 0, %s24
    %s28 = sphi 0, %s27
    %s44 = sphi 0, %s28
    %s50 = sphi 0, %s52
    %s53 = sphi 0, %s50
    %s54 = sphi 0, %s53
    %s70 = sphi 0, %s54
    %s74 = sphi 0, %s74
    %s76 = sphi 0, %s74
    %s77 = sphi 0, %s76
    %s91 = sphi 0, %s77
    %s95 = sphi 0, %s95
    %s97 = sphi 0, %s95
    %s98 = sphi 0, %s97
    %s112 = sphi 0, %s98
    %s116 = sphi 0, %s116
    %s118 = sphi 0, %s116
    %s119 = sphi 0, %s118
    %s133 = sphi 0, %s119
    %s137 = sphi 0, %s137
    %s139 = sphi 0, %s137
    %s140 = sphi 0, %s139
    %s154 = sphi 0, %s140
    %s158 = sphi 0, %s158
    %s160 = sphi 0, %s158
    %s161 = sphi 0, %s160
    %s175 = sphi 0, %s161
    %s179 = sphi 0, %s179
    %s181 = sphi 0, %s179
    %s182 = sphi 0, %s181
    %s196 = sphi 0, %s182
    %s202 = sphi 0, %s204
    %s205 = sphi 0, %s202
    %s206 = sphi 0, %s205
    %s222 = sphi 0, %s206
  $region4: #{tpu_custom_call.1} parent=0 // loop_header_branch
    %17 = sbr.rel (%p15) target = $region8
  $region5: #{tpu_custom_call.1} parent=0 // loop_body
    %s19 = ssub.s32 %s14, 1
    %s20 = ssub.s32 %s14, 2
    %s21 = sadd.s32 %s14, 1
    %s22 = ssub.s32 %s14, %s21
    %p23 = scmp.eq.s32.totalorder %s22, 0
    %s25 = sadd.s32 %s24, 1
    %s26 = scalar_select %p23, %s24, %s25
    %p29 = pneg %p23
    %p30 = scmp.eq.s32.totalorder %s14, 1
    %p31 = por %p29, %p30
    %p32 = scmp.ne.s32.totalorder %s24, %s27
    %p33 = scmp.eq.s32.totalorder %s14, 0
    %p34 = por %p32, %p33
    %p35 = scmp.ne.s32.totalorder %s24, %s27
    %p36 = scmp.eq.s32.totalorder %s19, 1
    %p37 = por %p35, %p36
    %p38 = scmp.ne.s32.totalorder %s27, %s28
    %p39 = scmp.eq.s32.totalorder %s19, 0
    %p40 = por %p38, %p39
    %p41 = scmp.ne.s32.totalorder %s27, %s28
    %p42 = scmp.eq.s32.totalorder %s20, 1
    %p43 = por %p41, %p42
    %p45 = scmp.ne.s32.totalorder %s28, %s44
    %p46 = scmp.eq.s32.totalorder %s20, 0
    %p47 = por %p45, %p46
    %s48 = ssub.s32 %s14, %s21
    %p49 = scmp.eq.s32.totalorder %s48, 0
    %s51 = sadd.s32 %s50, 1
    %s52 = scalar_select %p49, %s50, %s51
    %p55 = pneg %p49
    %p56 = scmp.eq.s32.totalorder %s14, 1
    %p57 = por %p55, %p56
    %p58 = scmp.ne.s32.totalorder %s50, %s53
    %p59 = scmp.eq.s32.totalorder %s14, 0
    %p60 = por %p58, %p59
    %p61 = scmp.ne.s32.totalorder %s50, %s53
    %p62 = scmp.eq.s32.totalorder %s19, 1
    %p63 = por %p61, %p62
    %p64 = scmp.ne.s32.totalorder %s53, %s54
    %p65 = scmp.eq.s32.totalorder %s19, 0
    %p66 = por %p64, %p65
    %p67 = scmp.ne.s32.totalorder %s53, %s54
    %p68 = scmp.eq.s32.totalorder %s20, 1
    %p69 = por %p67, %p68
    %p71 = scmp.ne.s32.totalorder %s54, %s70
    %p72 = scmp.eq.s32.totalorder %s20, 0
    %p73 = por %p71, %p72
    %s75 = sadd.s32 %s74, 1
    %p78 = scmp.eq.s32.totalorder %s14, 1
    %p79 = scmp.ne.s32.totalorder %s74, %s76
    %p80 = scmp.eq.s32.totalorder %s14, 0
    %p81 = por %p79, %p80
    %p82 = scmp.ne.s32.totalorder %s74, %s76
    %p83 = scmp.eq.s32.totalorder %s19, 1
    %p84 = por %p82, %p83
    %p85 = scmp.ne.s32.totalorder %s76, %s77
    %p86 = scmp.eq.s32.totalorder %s19, 0
    %p87 = por %p85, %p86
    %p88 = scmp.ne.s32.totalorder %s76, %s77
    %p89 = scmp.eq.s32.totalorder %s20, 1
    %p90 = por %p88, %p89
    %p92 = scmp.ne.s32.totalorder %s77, %s91
    %p93 = scmp.eq.s32.totalorder %s20, 0
    %p94 = por %p92, %p93
    %s96 = sadd.s32 %s95, 1
    %p99 = scmp.eq.s32.totalorder %s14, 1
    %p100 = scmp.ne.s32.totalorder %s95, %s97
    %p101 = scmp.eq.s32.totalorder %s14, 0
    %p102 = por %p100, %p101
    %p103 = scmp.ne.s32.totalorder %s95, %s97
    %p104 = scmp.eq.s32.totalorder %s19, 1
    %p105 = por %p103, %p104
    %p106 = scmp.ne.s32.totalorder %s97, %s98
    %p107 = scmp.eq.s32.totalorder %s19, 0
    %p108 = por %p106, %p107
    %p109 = scmp.ne.s32.totalorder %s97, %s98
    %p110 = scmp.eq.s32.totalorder %s20, 1
    %p111 = por %p109, %p110
    %p113 = scmp.ne.s32.totalorder %s98, %s112
    %p114 = scmp.eq.s32.totalorder %s20, 0
    %p115 = por %p113, %p114
    %s117 = sadd.s32 %s116, 1
    %p120 = scmp.eq.s32.totalorder %s14, 1
    %p121 = scmp.ne.s32.totalorder %s116, %s118
    %p122 = scmp.eq.s32.totalorder %s14, 0
    %p123 = por %p121, %p122
    %p124 = scmp.ne.s32.totalorder %s116, %s118
    %p125 = scmp.eq.s32.totalorder %s19, 1
    %p126 = por %p124, %p125
    %p127 = scmp.ne.s32.totalorder %s118, %s119
    %p128 = scmp.eq.s32.totalorder %s19, 0
    %p129 = por %p127, %p128
    %p130 = scmp.ne.s32.totalorder %s118, %s119
    %p131 = scmp.eq.s32.totalorder %s20, 1
    %p132 = por %p130, %p131
    %p134 = scmp.ne.s32.totalorder %s119, %s133
    %p135 = scmp.eq.s32.totalorder %s20, 0
    %p136 = por %p134, %p135
    %s138 = sadd.s32 %s137, 1
    %p141 = scmp.eq.s32.totalorder %s14, 1
    %p142 = scmp.ne.s32.totalorder %s137, %s139
    %p143 = scmp.eq.s32.totalorder %s14, 0
    %p144 = por %p142, %p143
    %p145 = scmp.ne.s32.totalorder %s137, %s139
    %p146 = scmp.eq.s32.totalorder %s19, 1
    %p147 = por %p145, %p146
    %p148 = scmp.ne.s32.totalorder %s139, %s140
    %p149 = scmp.eq.s32.totalorder %s19, 0
    %p150 = por %p148, %p149
    %p151 = scmp.ne.s32.totalorder %s139, %s140
    %p152 = scmp.eq.s32.totalorder %s20, 1
    %p153 = por %p151, %p152
    %p155 = scmp.ne.s32.totalorder %s140, %s154
    %p156 = scmp.eq.s32.totalorder %s20, 0
    %p157 = por %p155, %p156
    %s159 = sadd.s32 %s158, 1
    %p162 = scmp.eq.s32.totalorder %s14, 1
    %p163 = scmp.ne.s32.totalorder %s158, %s160
    %p164 = scmp.eq.s32.totalorder %s14, 0
    %p165 = por %p163, %p164
    %p166 = scmp.ne.s32.totalorder %s158, %s160
    %p167 = scmp.eq.s32.totalorder %s19, 1
    %p168 = por %p166, %p167
    %p169 = scmp.ne.s32.totalorder %s160, %s161
    %p170 = scmp.eq.s32.totalorder %s19, 0
    %p171 = por %p169, %p170
    %p172 = scmp.ne.s32.totalorder %s160, %s161
    %p173 = scmp.eq.s32.totalorder %s20, 1
    %p174 = por %p172, %p173
    %p176 = scmp.ne.s32.totalorder %s161, %s175
    %p177 = scmp.eq.s32.totalorder %s20, 0
    %p178 = por %p176, %p177
    %s180 = sadd.s32 %s179, 1
    %p183 = scmp.eq.s32.totalorder %s14, 1
    %p184 = scmp.ne.s32.totalorder %s179, %s181
    %p185 = scmp.eq.s32.totalorder %s14, 0
    %p186 = por %p184, %p185
    %p187 = scmp.ne.s32.totalorder %s179, %s181
    %p188 = scmp.eq.s32.totalorder %s19, 1
    %p189 = por %p187, %p188
    %p190 = scmp.ne.s32.totalorder %s181, %s182
    %p191 = scmp.eq.s32.totalorder %s19, 0
    %p192 = por %p190, %p191
    %p193 = scmp.ne.s32.totalorder %s181, %s182
    %p194 = scmp.eq.s32.totalorder %s20, 1
    %p195 = por %p193, %p194
    %p197 = scmp.ne.s32.totalorder %s182, %s196
    %p198 = scmp.eq.s32.totalorder %s20, 0
    %p199 = por %p197, %p198
    %s200 = ssub.s32 %s14, %s21
    %p201 = scmp.eq.s32.totalorder %s200, 0
    %s203 = sadd.s32 %s202, 1
    %s204 = scalar_select %p201, %s202, %s203
    %p207 = pneg %p201
    %p208 = scmp.eq.s32.totalorder %s14, 1
    %p209 = por %p207, %p208
    %p210 = scmp.ne.s32.totalorder %s202, %s205
    %p211 = scmp.eq.s32.totalorder %s14, 0
    %p212 = por %p210, %p211
    %p213 = scmp.ne.s32.totalorder %s202, %s205
    %p214 = scmp.eq.s32.totalorder %s19, 1
    %p215 = por %p213, %p214
    %p216 = scmp.ne.s32.totalorder %s205, %s206
    %p217 = scmp.eq.s32.totalorder %s19, 0
    %p218 = por %p216, %p217
    %p219 = scmp.ne.s32.totalorder %s205, %s206
    %p220 = scmp.eq.s32.totalorder %s20, 1
    %p221 = por %p219, %p220
    %p223 = scmp.ne.s32.totalorder %s206, %s222
    %p224 = scmp.eq.s32.totalorder %s20, 0
    %p225 = por %p223, %p224
    %p226 = scmp.le.s32.totalorder 1, %s14
    %p227 = scmp.lt.s32.totalorder %s14, 3
    %p228 = pnand %p226, %p227
    %p229 = pneg %p228
    // Predicated region
    $region9: #{tpu_custom_call.1} parent=5 // pred_check
      _
    $region10: #{tpu_custom_call.1} parent=5 // pred_check_branch
      %231 = sbr.rel (%p228) target = $region12
    $region11: #{tpu_custom_call.1} parent=5 // pred_region
      %s232 = ssub.s32 %s14, 1
      // Predicated region
      $region13: #{tpu_custom_call.1} parent=11 // pred_check
        %p233 = pneg %p87
      $region14: #{tpu_custom_call.1} parent=11 // pred_check_branch
        %235 = sbr.rel (%p233) target = $region16
      $region15: #{tpu_custom_call.1} parent=11 // pred_region
        _
      $region16: #{tpu_custom_call.1} parent=11 // pred_fallthru
        _
      // Predicated region
      $region17: #{tpu_custom_call.1} parent=11 // pred_check
        %p236 = pneg %p108
      $region18: #{tpu_custom_call.1} parent=11 // pred_check_branch
        %238 = sbr.rel (%p236) target = $region20
      $region19: #{tpu_custom_call.1} parent=11 // pred_region
        _
      $region20: #{tpu_custom_call.1} parent=11 // pred_fallthru
        _
      // Predicated region
      $region21: #{tpu_custom_call.1} parent=11 // pred_check
        %p239 = pneg %p129
      $region22: #{tpu_custom_call.1} parent=11 // pred_check_branch
        %241 = sbr.rel (%p239) target = $region24
      $region23: #{tpu_custom_call.1} parent=11 // pred_region
        _
      $region24: #{tpu_custom_call.1} parent=11 // pred_fallthru
        _
      // Predicated region
      $region25: #{tpu_custom_call.1} parent=11 // pred_check
        %p242 = pneg %p150
      $region26: #{tpu_custom_call.1} parent=11 // pred_check_branch
        %244 = sbr.rel (%p242) target = $region28
      $region27: #{tpu_custom_call.1} parent=11 // pred_region
        _
      $region28: #{tpu_custom_call.1} parent=11 // pred_fallthru
        _
      // Predicated region
      $region29: #{tpu_custom_call.1} parent=11 // pred_check
        %p245 = pneg %p171
      $region30: #{tpu_custom_call.1} parent=11 // pred_check_branch
        %247 = sbr.rel (%p245) target = $region32
      $region31: #{tpu_custom_call.1} parent=11 // pred_region
        _
      $region32: #{tpu_custom_call.1} parent=11 // pred_fallthru
        _
      // Predicated region
      $region33: #{tpu_custom_call.1} parent=11 // pred_check
        %p248 = pneg %p192
      $region34: #{tpu_custom_call.1} parent=11 // pred_check_branch
        %250 = sbr.rel (%p248) target = $region36
      $region35: #{tpu_custom_call.1} parent=11 // pred_region
        _
      $region36: #{tpu_custom_call.1} parent=11 // pred_fallthru
        _
    $region12: #{tpu_custom_call.1} parent=5 // pred_fallthru
      _
    %p251 = scmp.lt.s32.totalorder %s14, 2
    // Predicated region
    $region37: #{tpu_custom_call.1} parent=5 // pred_check
      %p252 = pneg %p251
    $region38: #{tpu_custom_call.1} parent=5 // pred_check_branch
      %254 = sbr.rel (%p252) target = $region40
    $region39: #{tpu_custom_call.1} parent=5 // pred_region
      // Predicated region
      $region41: #{tpu_custom_call.1} parent=39 // pred_check
        %p255 = pneg %p34
      $region42: #{tpu_custom_call.1} parent=39 // pred_check_branch
        %257 = sbr.rel (%p255) target = $region44
      $region43: #{tpu_custom_call.1} parent=39 // pred_region
        %p258 = scmp.lt.s32.totalorder %s14, 1
        %s259 = scalar_select %p258, %s14, 1
        %s260 = smul.addr %s259, 32
        %s261 = smul.addr %s260, 8
        %s262 = scalar_lea.vmem %s0, %s261
      $region44: #{tpu_custom_call.1} parent=39 // pred_fallthru
        _
      // Predicated region
      $region45: #{tpu_custom_call.1} parent=39 // pred_check
        %p263 = pneg %p60
      $region46: #{tpu_custom_call.1} parent=39 // pred_check_branch
        %265 = sbr.rel (%p263) target = $region48
      $region47: #{tpu_custom_call.1} parent=39 // pred_region
        %p266 = scmp.lt.s32.totalorder %s14, 1
        %s267 = scalar_select %p266, %s14, 1
        %s268 = scalar_lea.vmem %s1, %s267
      $region48: #{tpu_custom_call.1} parent=39 // pred_fallthru
        _
    $region40: #{tpu_custom_call.1} parent=5 // pred_fallthru
      _
    %p269 = scmp.le.s32.totalorder 1, %s14
    %p270 = scmp.lt.s32.totalorder %s14, 3
    %p271 = pnand %p269, %p270
    %p272 = pneg %p271
    // Predicated region
    $region49: #{tpu_custom_call.1} parent=5 // pred_check
      _
    $region50: #{tpu_custom_call.1} parent=5 // pred_check_branch
      %274 = sbr.rel (%p271) target = $region52
    $region51: #{tpu_custom_call.1} parent=5 // pred_region
      %s275 = ssub.s32 %s14, 1
      %p276 = scmp.lt.s32.totalorder %s19, 1
      %s277 = scalar_select %p276, %s19, 1
      %s278 = smul.addr %s277, 32
      %s279 = smul.addr %s278, 8
      %s280 = scalar_lea.vmem %s0, %s279
      %p281 = pneg %p40
      %p282 = pneg %p37
      %p283 = scmp.lt.s32.totalorder %s19, 1
      %s284 = scalar_select %p283, %s19, 1
      %s285 = scalar_lea.vmem %s1, %s284
      %p286 = pneg %p66
      %p287 = pneg %p63
      %p288 = pneg %p87
      %p289 = pneg %p84
      %p290 = pneg %p108
      %p291 = pneg %p105
      %p292 = pneg %p129
      %p293 = pneg %p126
      %p294 = pneg %p150
      %p295 = pneg %p147
      %p296 = pneg %p171
      %p297 = pneg %p168
      %p298 = pneg %p192
      %p299 = pneg %p189
      %p300 = pneg %p218
      %p301 = pneg %p215
      %p302 = scmp.lt.s32.totalorder %s19, 1
      %s303 = scalar_select %p302, %s19, 1
      %s304 = smul.addr %s303, 32
      %s305 = smul.addr %s304, 4
      %s306 = scalar_lea.vmem %s8, %s305
      %p307 = scmp.lt.s32.totalorder %s19, 1
      %s308 = scalar_select %p307, %s19, 1
      %s309 = smul.addr %s308, 32
      %s310 = smul.addr %s309, 8
      %s311 = scalar_lea.vmem %s0, %s310
      %p312 = scmp.lt.s32.totalorder %s19, 1
      %s313 = scalar_select %p312, %s19, 1
      %s314 = scalar_lea.vmem %s1, %s313
      %p315 = scmp.lt.s32.totalorder %s19, 1
      %s316 = scalar_select %p315, %s19, 1
      %s317 = smul.addr %s316, 32
      %s318 = smul.addr %s317, 4
      %s319 = scalar_lea.vmem %s8, %s318
      %v321 = vld [vmem:[%s311] sm:$0xff]
      %v322 = vld [vmem:[%s311 + $0x8] sm:$0xff]
      %v323 = vld [vmem:[%s311 + $0x10] sm:$0xff]
      %v324 = vld [vmem:[%s311 + $0x18] sm:$0xff]
      %v325 = vld [vmem:[%s311 + $0x20] sm:$0xff]
      %v326 = vld [vmem:[%s311 + $0x28] sm:$0xff]
      %v327 = vld [vmem:[%s311 + $0x30] sm:$0xff]
      %v328 = vld [vmem:[%s311 + $0x38] sm:$0xff]
      %v329 = vld [vmem:[%s311 + $0x40] sm:$0xff]
      %v330 = vld [vmem:[%s311 + $0x48] sm:$0xff]
      %v331 = vld [vmem:[%s311 + $0x50] sm:$0xff]
      %v332 = vld [vmem:[%s311 + $0x58] sm:$0xff]
      %v333 = vld [vmem:[%s311 + $0x60] sm:$0xff]
      %v334 = vld [vmem:[%s311 + $0x68] sm:$0xff]
      %v335 = vld [vmem:[%s311 + $0x70] sm:$0xff]
      %v336 = vld [vmem:[%s311 + $0x78] sm:$0xff]
      %v337 = vld [vmem:[%s311 + $0x80] sm:$0xff]
      %v338 = vld [vmem:[%s311 + $0x88] sm:$0xff]
      %v339 = vld [vmem:[%s311 + $0x90] sm:$0xff]
      %v340 = vld [vmem:[%s311 + $0x98] sm:$0xff]
      %v341 = vld [vmem:[%s311 + $0xa0] sm:$0xff]
      %v342 = vld [vmem:[%s311 + $0xa8] sm:$0xff]
      %v343 = vld [vmem:[%s311 + $0xb0] sm:$0xff]
      %v344 = vld [vmem:[%s311 + $0xb8] sm:$0xff]
      %v345 = vld [vmem:[%s311 + $0xc0] sm:$0xff]
      %v346 = vld [vmem:[%s311 + $0xc8] sm:$0xff]
      %v347 = vld [vmem:[%s311 + $0xd0] sm:$0xff]
      %v348 = vld [vmem:[%s311 + $0xd8] sm:$0xff]
      %v349 = vld [vmem:[%s311 + $0xe0] sm:$0xff]
      %v350 = vld [vmem:[%s311 + $0xe8] sm:$0xff]
      %v351 = vld [vmem:[%s311 + $0xf0] sm:$0xff]
      %v352 = vld [vmem:[%s311 + $0xf8] sm:$0xff]
      %v353 = vld [vmem:[%s314] sm:$0x1]
      %v354 = vld [vmem:[%s2] sm:$0xff]
      %v355 = vld [vmem:[%s2 + $0x8] sm:$0xff]
      %v356 = vld [vmem:[%s2 + $0x10] sm:$0xff]
      %v357 = vld [vmem:[%s2 + $0x18] sm:$0xff]
      %v358 = vld [vmem:[%s2 + $0x20] sm:$0xff]
      %v359 = vld [vmem:[%s2 + $0x28] sm:$0xff]
      %v360 = vld [vmem:[%s2 + $0x30] sm:$0xff]
      %v361 = vld [vmem:[%s2 + $0x38] sm:$0xff]
      %v362 = vld [vmem:[%s3] sm:$0x1]
      %vm363 = vcmask 523264
      %v365 = vsel %vm363, %v353, 0
      %367 = vmatpush.msra.mxu0 0.0
      %368 = vmatpush.msra.mxu0 0.0
      %369 = vmatpush.msra.mxu0 0.0
      %370 = vmatpush.msra.mxu0 0.0
      %371 = vmatpush.msra.mxu0 0.0
      %372 = vmatpush.msra.mxu0 0.0
      %373 = vmatpush.msra.mxu0 0.0
      %374 = vmatpush.msra.mxu0 0.0
      %375 = vmatpush.msra.mxu0 %v361
      %376 = vmatpush.msra.mxu0 %v360
      %377 = vmatpush.msra.mxu0 %v359
      %378 = vmatpush.msra.mxu0 %v358
      %379 = vmatpush.msra.mxu0 %v357
      %380 = vmatpush.msra.mxu0 %v356
      %381 = vmatpush.msra.mxu0 %v355
      %382 = vmatpush.msra.mxu0 %v354
      %383 = vmatmul.f32.gmra.mxu0 %v365
      %v384 = vpop.f32.mrf.mxu0
      %v385 = vadd.f32 %v362, %v384
      %386 = vdwg.mxu0
      %v387 = vld [vmem:[%s4] sm:$0xff]
      %v388 = vld [vmem:[%s4 + $0x8] sm:$0xff]
      %v389 = vld [vmem:[%s4 + $0x10] sm:$0xff]
      %v390 = vld [vmem:[%s4 + $0x18] sm:$0xff]
      %v391 = vld [vmem:[%s4 + $0x20] sm:$0xff]
      %v392 = vld [vmem:[%s4 + $0x28] sm:$0xff]
      %v393 = vld [vmem:[%s4 + $0x30] sm:$0xff]
      %v394 = vld [vmem:[%s4 + $0x38] sm:$0xff]
      %v395 = vld [vmem:[%s5] sm:$0x1]
      %396 = vmatpush.msra.mxu0 0.0
      %397 = vmatpush.msra.mxu0 0.0
      %398 = vmatpush.msra.mxu0 0.0
      %399 = vmatpush.msra.mxu0 0.0
      %400 = vmatpush.msra.mxu0 0.0
      %401 = vmatpush.msra.mxu0 0.0
      %402 = vmatpush.msra.mxu0 0.0
      %403 = vmatpush.msra.mxu0 0.0
      %404 = vmatpush.msra.mxu0 %v394
      %405 = vmatpush.msra.mxu0 %v393
      %406 = vmatpush.msra.mxu0 %v392
      %407 = vmatpush.msra.mxu0 %v391
      %408 = vmatpush.msra.mxu0 %v390
      %409 = vmatpush.msra.mxu0 %v389
      %410 = vmatpush.msra.mxu0 %v388
      %411 = vmatpush.msra.mxu0 %v387
      %412 = vmatmul.f32.gmra.mxu0 %v365
      %v413 = vpop.f32.mrf.mxu0
      %v414 = vadd.f32 %v395, %v413
      %415 = vdwg.mxu0
      %vm416 = vcmask 261120
      %v417 = vsel %vm416, %v321, 0.0
      %v418 = vsel %vm416, %v322, 0.0
      %v419 = vadd.f32 %v417, %v418
      %v420 = vsel %vm416, %v323, 0.0
      %v421 = vadd.f32 %v419, %v420
      %v422 = vsel %vm416, %v324, 0.0
      %v423 = vadd.f32 %v421, %v422
      %v424 = vsel %vm416, %v325, 0.0
      %v425 = vadd.f32 %v423, %v424
      %v426 = vsel %vm416, %v326, 0.0
      %v427 = vadd.f32 %v425, %v426
      %v428 = vsel %vm416, %v327, 0.0
      %v429 = vadd.f32 %v427, %v428
      %v430 = vsel %vm416, %v328, 0.0
      %v431 = vadd.f32 %v429, %v430
      %v432 = vsel %vm416, %v329, 0.0
      %v433 = vadd.f32 %v431, %v432
      %v434 = vsel %vm416, %v330, 0.0
      %v435 = vadd.f32 %v433, %v434
      %v436 = vsel %vm416, %v331, 0.0
      %v437 = vadd.f32 %v435, %v436
      %v438 = vsel %vm416, %v332, 0.0
      %v439 = vadd.f32 %v437, %v438
      %v440 = vsel %vm416, %v333, 0.0
      %v441 = vadd.f32 %v439, %v440
      %v442 = vsel %vm416, %v334, 0.0
      %v443 = vadd.f32 %v441, %v442
      %v444 = vsel %vm416, %v335, 0.0
      %v445 = vadd.f32 %v443, %v444
      %v446 = vsel %vm416, %v336, 0.0
      %v447 = vadd.f32 %v445, %v446
      %v448 = vsel %vm416, %v337, 0.0
      %v449 = vadd.f32 %v447, %v448
      %v450 = vsel %vm416, %v338, 0.0
      %v451 = vadd.f32 %v449, %v450
      %v452 = vsel %vm416, %v339, 0.0
      %v453 = vadd.f32 %v451, %v452
      %v454 = vsel %vm416, %v340, 0.0
      %v455 = vadd.f32 %v453, %v454
      %v456 = vsel %vm416, %v341, 0.0
      %v457 = vadd.f32 %v455, %v456
      %v458 = vsel %vm416, %v342, 0.0
      %v459 = vadd.f32 %v457, %v458
      %v460 = vsel %vm416, %v343, 0.0
      %v461 = vadd.f32 %v459, %v460
      %v462 = vsel %vm416, %v344, 0.0
      %v463 = vadd.f32 %v461, %v462
      %v464 = vsel %vm416, %v345, 0.0
      %v465 = vadd.f32 %v463, %v464
      %v466 = vsel %vm416, %v346, 0.0
      %v467 = vadd.f32 %v465, %v466
      %v468 = vsel %vm416, %v347, 0.0
      %v469 = vadd.f32 %v467, %v468
      %v470 = vsel %vm416, %v348, 0.0
      %v471 = vadd.f32 %v469, %v470
      %v472 = vsel %vm416, %v349, 0.0
      %v473 = vadd.f32 %v471, %v472
      %v474 = vsel %vm416, %v350, 0.0
      %v475 = vadd.f32 %v473, %v474
      %v476 = vsel %vm416, %v351, 0.0
      %v477 = vadd.f32 %v475, %v476
      %v478 = vsel %vm416, %v352, 0.0
      %v479 = vadd.f32 %v477, %v478
      %v480 = vrot.slane %v479, 4
      %v481 = vadd.f32 %v479, %v480
      %v482 = vrot.slane %v481, 2
      %v483 = vadd.f32 %v481, %v482
      %v484 = vrot.slane %v483, 1
      %v485 = vadd.f32 %v483, %v484
      %v486 = vrcp.pop 256.0
      %v487 = vmul.f32 256.0, %v486
      %v488 = vsub.f32 1.0, %v487
      %v489 = vmul.f32 %v486, %v488
      %v490 = vadd.f32 %v486, %v489
      %vm491 = vweird.f32 %v486
      %v492 = vsel %vm491, %v486, %v490
      %v493 = vmul.f32 %v485, %v492
      %v494 = vsub.f32 %v321, %v493
      %v495 = vsub.f32 %v322, %v493
      %v496 = vsub.f32 %v323, %v493
      %v497 = vsub.f32 %v324, %v493
      %v498 = vsub.f32 %v325, %v493
      %v499 = vsub.f32 %v326, %v493
      %v500 = vsub.f32 %v327, %v493
      %v501 = vsub.f32 %v328, %v493
      %v502 = vsub.f32 %v329, %v493
      %v503 = vsub.f32 %v330, %v493
      %v504 = vsub.f32 %v331, %v493
      %v505 = vsub.f32 %v332, %v493
      %v506 = vsub.f32 %v333, %v493
      %v507 = vsub.f32 %v334, %v493
      %v508 = vsub.f32 %v335, %v493
      %v509 = vsub.f32 %v336, %v493
      %v510 = vsub.f32 %v337, %v493
      %v511 = vsub.f32 %v338, %v493
      %v512 = vsub.f32 %v339, %v493
      %v513 = vsub.f32 %v340, %v493
      %v514 = vsub.f32 %v341, %v493
      %v515 = vsub.f32 %v342, %v493
      %v516 = vsub.f32 %v343, %v493
      %v517 = vsub.f32 %v344, %v493
      %v518 = vsub.f32 %v345, %v493
      %v519 = vsub.f32 %v346, %v493
      %v520 = vsub.f32 %v347, %v493
      %v521 = vsub.f32 %v348, %v493
      %v522 = vsub.f32 %v349, %v493
      %v523 = vsub.f32 %v350, %v493
      %v524 = vsub.f32 %v351, %v493
      %v525 = vsub.f32 %v352, %v493
      %v526 = vmul.f32 %v494, %v494
      %v527 = vmul.f32 %v495, %v495
      %v528 = vmul.f32 %v496, %v496
      %v529 = vmul.f32 %v497, %v497
      %v530 = vmul.f32 %v498, %v498
      %v531 = vmul.f32 %v499, %v499
      %v532 = vmul.f32 %v500, %v500
      %v533 = vmul.f32 %v501, %v501
      %v534 = vmul.f32 %v502, %v502
      %v535 = vmul.f32 %v503, %v503
      %v536 = vmul.f32 %v504, %v504
      %v537 = vmul.f32 %v505, %v505
      %v538 = vmul.f32 %v506, %v506
      %v539 = vmul.f32 %v507, %v507
      %v540 = vmul.f32 %v508, %v508
      %v541 = vmul.f32 %v509, %v509
      %v542 = vmul.f32 %v510, %v510
      %v543 = vmul.f32 %v511, %v511
      %v544 = vmul.f32 %v512, %v512
      %v545 = vmul.f32 %v513, %v513
      %v546 = vmul.f32 %v514, %v514
      %v547 = vmul.f32 %v515, %v515
      %v548 = vmul.f32 %v516, %v516
      %v549 = vmul.f32 %v517, %v517
      %v550 = vmul.f32 %v518, %v518
      %v551 = vmul.f32 %v519, %v519
      %v552 = vmul.f32 %v520, %v520
      %v553 = vmul.f32 %v521, %v521
      %v554 = vmul.f32 %v522, %v522
      %v555 = vmul.f32 %v523, %v523
      %v556 = vmul.f32 %v524, %v524
      %v557 = vmul.f32 %v525, %v525
      %v558 = vsel %vm416, %v526, 0.0
      %v559 = vsel %vm416, %v527, 0.0
      %v560 = vadd.f32 %v558, %v559
      %v561 = vsel %vm416, %v528, 0.0
      %v562 = vadd.f32 %v560, %v561
      %v563 = vsel %vm416, %v529, 0.0
      %v564 = vadd.f32 %v562, %v563
      %v565 = vsel %vm416, %v530, 0.0
      %v566 = vadd.f32 %v564, %v565
      %v567 = vsel %vm416, %v531, 0.0
      %v568 = vadd.f32 %v566, %v567
      %v569 = vsel %vm416, %v532, 0.0
      %v570 = vadd.f32 %v568, %v569
      %v571 = vsel %vm416, %v533, 0.0
      %v572 = vadd.f32 %v570, %v571
      %v573 = vsel %vm416, %v534, 0.0
      %v574 = vadd.f32 %v572, %v573
      %v575 = vsel %vm416, %v535, 0.0
      %v576 = vadd.f32 %v574, %v575
      %v577 = vsel %vm416, %v536, 0.0
      %v578 = vadd.f32 %v576, %v577
      %v579 = vsel %vm416, %v537, 0.0
      %v580 = vadd.f32 %v578, %v579
      %v581 = vsel %vm416, %v538, 0.0
      %v582 = vadd.f32 %v580, %v581
      %v583 = vsel %vm416, %v539, 0.0
      %v584 = vadd.f32 %v582, %v583
      %v585 = vsel %vm416, %v540, 0.0
      %v586 = vadd.f32 %v584, %v585
      %v587 = vsel %vm416, %v541, 0.0
      %v588 = vadd.f32 %v586, %v587
      %v589 = vsel %vm416, %v542, 0.0
      %v590 = vadd.f32 %v588, %v589
      %v591 = vsel %vm416, %v543, 0.0
      %v592 = vadd.f32 %v590, %v591
      %v593 = vsel %vm416, %v544, 0.0
      %v594 = vadd.f32 %v592, %v593
      %v595 = vsel %vm416, %v545, 0.0
      %v596 = vadd.f32 %v594, %v595
      %v597 = vsel %vm416, %v546, 0.0
      %v598 = vadd.f32 %v596, %v597
      %v599 = vsel %vm416, %v547, 0.0
      %v600 = vadd.f32 %v598, %v599
      %v601 = vsel %vm416, %v548, 0.0
      %v602 = vadd.f32 %v600, %v601
      %v603 = vsel %vm416, %v549, 0.0
      %v604 = vadd.f32 %v602, %v603
      %v605 = vsel %vm416, %v550, 0.0
      %v606 = vadd.f32 %v604, %v605
      %v607 = vsel %vm416, %v551, 0.0
      %v608 = vadd.f32 %v606, %v607
      %v609 = vsel %vm416, %v552, 0.0
      %v610 = vadd.f32 %v608, %v609
      %v611 = vsel %vm416, %v553, 0.0
      %v612 = vadd.f32 %v610, %v611
      %v613 = vsel %vm416, %v554, 0.0
      %v614 = vadd.f32 %v612, %v613
      %v615 = vsel %vm416, %v555, 0.0
      %v616 = vadd.f32 %v614, %v615
      %v617 = vsel %vm416, %v556, 0.0
      %v618 = vadd.f32 %v616, %v617
      %v619 = vsel %vm416, %v557, 0.0
      %v620 = vadd.f32 %v618, %v619
      %v621 = vrot.slane %v620, 4
      %v622 = vadd.f32 %v620, %v621
      %v623 = vrot.slane %v622, 2
      %v624 = vadd.f32 %v622, %v623
      %v625 = vrot.slane %v624, 1
      %v626 = vadd.f32 %v624, %v625
      %v627 = vmul.f32 %v626, %v492
      %v628 = vadd.f32 %v627, 1e-05
      %v629 = vrsqrt.pop %v628
      %v630 = vmul.f32 %v629, %v628
      %v631 = vmul.f32 %v630, %v629
      %v632 = vmul.f32 0.5, %v631
      %v633 = vsub.f32 1.5, %v632
      %v634 = vmul.f32 %v629, %v633
      %vm635 = vweird.f32 %v628
      %vm636 = vweird.f32 %v629
      %vm637 = vmor %vm635, %vm636
      %v638 = vsel %vm637, %v629, %v634
      %v639 = vmul.f32 %v494, %v638
      %v640 = vmul.f32 %v495, %v638
      %v641 = vmul.f32 %v496, %v638
      %v642 = vmul.f32 %v497, %v638
      %v643 = vmul.f32 %v498, %v638
      %v644 = vmul.f32 %v499, %v638
      %v645 = vmul.f32 %v500, %v638
      %v646 = vmul.f32 %v501, %v638
      %v647 = vmul.f32 %v502, %v638
      %v648 = vmul.f32 %v503, %v638
      %v649 = vmul.f32 %v504, %v638
      %v650 = vmul.f32 %v505, %v638
      %v651 = vmul.f32 %v506, %v638
      %v652 = vmul.f32 %v507, %v638
      %v653 = vmul.f32 %v508, %v638
      %v654 = vmul.f32 %v509, %v638
      %v655 = vmul.f32 %v510, %v638
      %v656 = vmul.f32 %v511, %v638
      %v657 = vmul.f32 %v512, %v638
      %v658 = vmul.f32 %v513, %v638
      %v659 = vmul.f32 %v514, %v638
      %v660 = vmul.f32 %v515, %v638
      %v661 = vmul.f32 %v516, %v638
      %v662 = vmul.f32 %v517, %v638
      %v663 = vmul.f32 %v518, %v638
      %v664 = vmul.f32 %v519, %v638
      %v665 = vmul.f32 %v520, %v638
      %v666 = vmul.f32 %v521, %v638
      %v667 = vmul.f32 %v522, %v638
      %v668 = vmul.f32 %v523, %v638
      %v669 = vmul.f32 %v524, %v638
      %v670 = vmul.f32 %v525, %v638
      %v671 = vperm.slane %v385, 0
      %v672 = vmul.f32 %v639, %v671
      %v673 = vmul.f32 %v640, %v671
      %v674 = vmul.f32 %v641, %v671
      %v675 = vmul.f32 %v642, %v671
      %v676 = vmul.f32 %v643, %v671
      %v677 = vmul.f32 %v644, %v671
      %v678 = vmul.f32 %v645, %v671
      %v679 = vmul.f32 %v646, %v671
      %v680 = vmul.f32 %v647, %v671
      %v681 = vmul.f32 %v648, %v671
      %v682 = vmul.f32 %v649, %v671
      %v683 = vmul.f32 %v650, %v671
      %v684 = vmul.f32 %v651, %v671
      %v685 = vmul.f32 %v652, %v671
      %v686 = vmul.f32 %v653, %v671
      %v687 = vmul.f32 %v654, %v671
      %v688 = vmul.f32 %v655, %v671
      %v689 = vmul.f32 %v656, %v671
      %v690 = vmul.f32 %v657, %v671
      %v691 = vmul.f32 %v658, %v671
      %v692 = vmul.f32 %v659, %v671
      %v693 = vmul.f32 %v660, %v671
      %v694 = vmul.f32 %v661, %v671
      %v695 = vmul.f32 %v662, %v671
      %v696 = vmul.f32 %v663, %v671
      %v697 = vmul.f32 %v664, %v671
      %v698 = vmul.f32 %v665, %v671
      %v699 = vmul.f32 %v666, %v671
      %v700 = vmul.f32 %v667, %v671
      %v701 = vmul.f32 %v668, %v671
      %v702 = vmul.f32 %v669, %v671
      %v703 = vmul.f32 %v670, %v671
      %v704 = vperm.slane %v414, 0
      %v705 = vadd.f32 %v672, %v704
      %v706 = vadd.f32 %v673, %v704
      %v707 = vadd.f32 %v674, %v704
      %v708 = vadd.f32 %v675, %v704
      %v709 = vadd.f32 %v676, %v704
      %v710 = vadd.f32 %v677, %v704
      %v711 = vadd.f32 %v678, %v704
      %v712 = vadd.f32 %v679, %v704
      %v713 = vadd.f32 %v680, %v704
      %v714 = vadd.f32 %v681, %v704
      %v715 = vadd.f32 %v682, %v704
      %v716 = vadd.f32 %v683, %v704
      %v717 = vadd.f32 %v684, %v704
      %v718 = vadd.f32 %v685, %v704
      %v719 = vadd.f32 %v686, %v704
      %v720 = vadd.f32 %v687, %v704
      %v721 = vadd.f32 %v688, %v704
      %v722 = vadd.f32 %v689, %v704
      %v723 = vadd.f32 %v690, %v704
      %v724 = vadd.f32 %v691, %v704
      %v725 = vadd.f32 %v692, %v704
      %v726 = vadd.f32 %v693, %v704
      %v727 = vadd.f32 %v694, %v704
      %v728 = vadd.f32 %v695, %v704
      %v729 = vadd.f32 %v696, %v704
      %v730 = vadd.f32 %v697, %v704
      %v731 = vadd.f32 %v698, %v704
      %v732 = vadd.f32 %v699, %v704
      %v733 = vadd.f32 %v700, %v704
      %v734 = vadd.f32 %v701, %v704
      %v735 = vadd.f32 %v702, %v704
      %v736 = vadd.f32 %v703, %v704
      %v737 = vpack.c.bf16 %v706, %v705
      %v738 = vpack.c.bf16 %v708, %v707
      %v739 = vpack.c.bf16 %v710, %v709
      %v740 = vpack.c.bf16 %v712, %v711
      %v741 = vpack.c.bf16 %v714, %v713
      %v742 = vpack.c.bf16 %v716, %v715
      %v743 = vpack.c.bf16 %v718, %v717
      %v744 = vpack.c.bf16 %v720, %v719
      %v745 = vpack.c.bf16 %v722, %v721
      %v746 = vpack.c.bf16 %v724, %v723
      %v747 = vpack.c.bf16 %v726, %v725
      %v748 = vpack.c.bf16 %v728, %v727
      %v749 = vpack.c.bf16 %v730, %v729
      %v750 = vpack.c.bf16 %v732, %v731
      %v751 = vpack.c.bf16 %v734, %v733
      %v752 = vpack.c.bf16 %v736, %v735
      %v753 = vld [vmem:[%s6] sm:$0xf]
      %v754 = vld [vmem:[%s6 + $0x4] sm:$0xf]
      %v755 = vld [vmem:[%s6 + $0x8] sm:$0xf]
      %v756 = vld [vmem:[%s6 + $0xc] sm:$0xf]
      %v757 = vld [vmem:[%s7] sm:$0x1]
      %v759 = vperm.slane %v757, 0
      %v765 = vunpack.c.l.b16 %v753
      %v766 = vunpack.c.l.b16 %v754
      %v767 = vunpack.c.l.b16 %v755
      %v768 = vunpack.c.l.b16 %v756
      %v769 = vpack.c.b16 %v766, %v765
      %v770 = vpack.c.b16 %v768, %v767
      %v774 = vsel %vm416, %v737, 0
      %v777 = vsel %vm416, %v738, 0
      %v780 = vsel %vm416, %v739, 0
      %v783 = vsel %vm416, %v740, 0
      %v786 = vsel %vm416, %v741, 0
      %v789 = vsel %vm416, %v742, 0
      %v792 = vsel %vm416, %v743, 0
      %v795 = vsel %vm416, %v744, 0
      %v798 = vsel %vm416, %v745, 0
      %v801 = vsel %vm416, %v746, 0
      %v804 = vsel %vm416, %v747, 0
      %v807 = vsel %vm416, %v748, 0
      %v810 = vsel %vm416, %v749, 0
      %v813 = vsel %vm416, %v750, 0
      %v816 = vsel %vm416, %v751, 0
      %v819 = vsel %vm416, %v752, 0
      %821 = vmatpush.bf16.msra.mxu0 0
      %822 = vmatpush.bf16.msra.mxu0 0
      %823 = vmatpush.bf16.msra.mxu0 0
      %824 = vmatpush.bf16.msra.mxu0 0
      %825 = vmatpush.bf16.msra.mxu0 0
      %826 = vmatpush.bf16.msra.mxu0 0
      %827 = vmatpush.bf16.msra.mxu0 %v770
      %828 = vmatpush.bf16.msra.mxu0 %v769
      %829 = vmatmul.bf16.gmra.mxu0 %v774
      %v830 = vpop.f32.mrf.mxu0
      %v831 = vadd.f32 %v759, %v830
      %v832 = vpop.f32.mrf.mxu0
      %v833 = vadd.f32 %v759, %v832
      %834 = vmatmul.bf16.gmra.mxu0 %v777
      %v835 = vpop.f32.mrf.mxu0
      %v836 = vadd.f32 %v759, %v835
      %v837 = vpop.f32.mrf.mxu0
      %v838 = vadd.f32 %v759, %v837
      %839 = vmatmul.bf16.gmra.mxu0 %v780
      %v840 = vpop.f32.mrf.mxu0
      %v841 = vadd.f32 %v759, %v840
      %v842 = vpop.f32.mrf.mxu0
      %v843 = vadd.f32 %v759, %v842
      %844 = vmatmul.bf16.gmra.mxu0 %v783
      %v845 = vpop.f32.mrf.mxu0
      %v846 = vadd.f32 %v759, %v845
      %v847 = vpop.f32.mrf.mxu0
      %v848 = vadd.f32 %v759, %v847
      %849 = vmatmul.bf16.gmra.mxu0 %v786
      %v850 = vpop.f32.mrf.mxu0
      %v851 = vadd.f32 %v759, %v850
      %v852 = vpop.f32.mrf.mxu0
      %v853 = vadd.f32 %v759, %v852
      %854 = vmatmul.bf16.gmra.mxu0 %v789
      %v855 = vpop.f32.mrf.mxu0
      %v856 = vadd.f32 %v759, %v855
      %v857 = vpop.f32.mrf.mxu0
      %v858 = vadd.f32 %v759, %v857
      %859 = vmatmul.bf16.gmra.mxu0 %v792
      %v860 = vpop.f32.mrf.mxu0
      %v861 = vadd.f32 %v759, %v860
      %v862 = vpop.f32.mrf.mxu0
      %v863 = vadd.f32 %v759, %v862
      %864 = vmatmul.bf16.gmra.mxu0 %v795
      %v865 = vpop.f32.mrf.mxu0
      %v866 = vadd.f32 %v759, %v865
      %v867 = vpop.f32.mrf.mxu0
      %v868 = vadd.f32 %v759, %v867
      %869 = vmatmul.bf16.gmra.mxu0 %v798
      %v870 = vpop.f32.mrf.mxu0
      %v871 = vadd.f32 %v759, %v870
      %v872 = vpop.f32.mrf.mxu0
      %v873 = vadd.f32 %v759, %v872
      %874 = vmatmul.bf16.gmra.mxu0 %v801
      %v875 = vpop.f32.mrf.mxu0
      %v876 = vadd.f32 %v759, %v875
      %v877 = vpop.f32.mrf.mxu0
      %v878 = vadd.f32 %v759, %v877
      %879 = vmatmul.bf16.gmra.mxu0 %v804
      %v880 = vpop.f32.mrf.mxu0
      %v881 = vadd.f32 %v759, %v880
      %v882 = vpop.f32.mrf.mxu0
      %v883 = vadd.f32 %v759, %v882
      %884 = vmatmul.bf16.gmra.mxu0 %v807
      %v885 = vpop.f32.mrf.mxu0
      %v886 = vadd.f32 %v759, %v885
      %v887 = vpop.f32.mrf.mxu0
      %v888 = vadd.f32 %v759, %v887
      %889 = vmatmul.bf16.gmra.mxu0 %v810
      %v890 = vpop.f32.mrf.mxu0
      %v891 = vadd.f32 %v759, %v890
      %v892 = vpop.f32.mrf.mxu0
      %v893 = vadd.f32 %v759, %v892
      %894 = vmatmul.bf16.gmra.mxu0 %v813
      %v895 = vpop.f32.mrf.mxu0
      %v896 = vadd.f32 %v759, %v895
      %v897 = vpop.f32.mrf.mxu0
      %v898 = vadd.f32 %v759, %v897
      %899 = vmatmul.bf16.gmra.mxu0 %v816
      %v900 = vpop.f32.mrf.mxu0
      %v901 = vadd.f32 %v759, %v900
      %v902 = vpop.f32.mrf.mxu0
      %v903 = vadd.f32 %v759, %v902
      %904 = vmatmul.bf16.gmra.mxu0 %v819
      %v905 = vpop.f32.mrf.mxu0
      %v906 = vadd.f32 %v759, %v905
      %v907 = vpop.f32.mrf.mxu0
      %v908 = vadd.f32 %v759, %v907
      %909 = vdwg.mxu0
      %v910 = vpack.c.bf16 %v831, %v831
      %v911 = vpack.c.bf16 %v833, %v833
      %v912 = vpack.c.bf16 %v836, %v836
      %v913 = vpack.c.bf16 %v838, %v838
      %v914 = vpack.c.bf16 %v841, %v841
      %v915 = vpack.c.bf16 %v843, %v843
      %v916 = vpack.c.bf16 %v846, %v846
      %v917 = vpack.c.bf16 %v848, %v848
      %v918 = vpack.c.bf16 %v851, %v851
      %v919 = vpack.c.bf16 %v853, %v853
      %v920 = vpack.c.bf16 %v856, %v856
      %v921 = vpack.c.bf16 %v858, %v858
      %v922 = vpack.c.bf16 %v861, %v861
      %v923 = vpack.c.bf16 %v863, %v863
      %v924 = vpack.c.bf16 %v866, %v866
      %v925 = vpack.c.bf16 %v868, %v868
      %v926 = vpack.c.bf16 %v871, %v871
      %v927 = vpack.c.bf16 %v873, %v873
      %v928 = vpack.c.bf16 %v876, %v876
      %v929 = vpack.c.bf16 %v878, %v878
      %v930 = vpack.c.bf16 %v881, %v881
      %v931 = vpack.c.bf16 %v883, %v883
      %v932 = vpack.c.bf16 %v886, %v886
      %v933 = vpack.c.bf16 %v888, %v888
      %v934 = vpack.c.bf16 %v891, %v891
      %v935 = vpack.c.bf16 %v893, %v893
      %v936 = vpack.c.bf16 %v896, %v896
      %v937 = vpack.c.bf16 %v898, %v898
      %v938 = vpack.c.bf16 %v901, %v901
      %v939 = vpack.c.bf16 %v903, %v903
      %v940 = vpack.c.bf16 %v906, %v906
      %v941 = vpack.c.bf16 %v908, %v908
      %vm942 = vcmask 781312
      %943 = vst.msk [vmem:[%s319] sm:$0xf] %vm942, %v910
      %944 = vst.msk [vmem:[%s319 + $0x4] sm:$0xf] %vm942, %v911
      %945 = vst.msk [vmem:[%s319 + $0x8] sm:$0xf] %vm942, %v912
      %946 = vst.msk [vmem:[%s319 + $0xc] sm:$0xf] %vm942, %v913
      %947 = vst.msk [vmem:[%s319 + $0x10] sm:$0xf] %vm942, %v914
      %948 = vst.msk [vmem:[%s319 + $0x14] sm:$0xf] %vm942, %v915
      %949 = vst.msk [vmem:[%s319 + $0x18] sm:$0xf] %vm942, %v916
      %950 = vst.msk [vmem:[%s319 + $0x1c] sm:$0xf] %vm942, %v917
      %951 = vst.msk [vmem:[%s319 + $0x20] sm:$0xf] %vm942, %v918
      %952 = vst.msk [vmem:[%s319 + $0x24] sm:$0xf] %vm942, %v919
      %953 = vst.msk [vmem:[%s319 + $0x28] sm:$0xf] %vm942, %v920
      %954 = vst.msk [vmem:[%s319 + $0x2c] sm:$0xf] %vm942, %v921
      %955 = vst.msk [vmem:[%s319 + $0x30] sm:$0xf] %vm942, %v922
      %956 = vst.msk [vmem:[%s319 + $0x34] sm:$0xf] %vm942, %v923
      %957 = vst.msk [vmem:[%s319 + $0x38] sm:$0xf] %vm942, %v924
      %958 = vst.msk [vmem:[%s319 + $0x3c] sm:$0xf] %vm942, %v925
      %959 = vst.msk [vmem:[%s319 + $0x40] sm:$0xf] %vm942, %v926
      %960 = vst.msk [vmem:[%s319 + $0x44] sm:$0xf] %vm942, %v927
      %961 = vst.msk [vmem:[%s319 + $0x48] sm:$0xf] %vm942, %v928
      %962 = vst.msk [vmem:[%s319 + $0x4c] sm:$0xf] %vm942, %v929
      %963 = vst.msk [vmem:[%s319 + $0x50] sm:$0xf] %vm942, %v930
      %964 = vst.msk [vmem:[%s319 + $0x54] sm:$0xf] %vm942, %v931
      %965 = vst.msk [vmem:[%s319 + $0x58] sm:$0xf] %vm942, %v932
      %966 = vst.msk [vmem:[%s319 + $0x5c] sm:$0xf] %vm942, %v933
      %967 = vst.msk [vmem:[%s319 + $0x60] sm:$0xf] %vm942, %v934
      %968 = vst.msk [vmem:[%s319 + $0x64] sm:$0xf] %vm942, %v935
      %969 = vst.msk [vmem:[%s319 + $0x68] sm:$0xf] %vm942, %v936
      %970 = vst.msk [vmem:[%s319 + $0x6c] sm:$0xf] %vm942, %v937
      %971 = vst.msk [vmem:[%s319 + $0x70] sm:$0xf] %vm942, %v938
      %972 = vst.msk [vmem:[%s319 + $0x74] sm:$0xf] %vm942, %v939
      %973 = vst.msk [vmem:[%s319 + $0x78] sm:$0xf] %vm942, %v940
      %974 = vst.msk [vmem:[%s319 + $0x7c] sm:$0xf] %vm942, %v941
      %p975 = scmp.lt.s32.totalorder %s19, 1
      %s976 = scalar_select %p975, %s19, 1
      %s977 = smul.addr %s976, 32
      %s978 = smul.addr %s977, 4
      %s979 = scalar_lea.vmem %s8, %s978
      // Predicated region
      $region53: #{tpu_custom_call.1} parent=51 // pred_check
        %p980 = pneg %p215
      $region54: #{tpu_custom_call.1} parent=51 // pred_check_branch
        %982 = sbr.rel (%p980) target = $region56
      $region55: #{tpu_custom_call.1} parent=51 // pred_region
        _
      $region56: #{tpu_custom_call.1} parent=51 // pred_fallthru
        _
    $region52: #{tpu_custom_call.1} parent=5 // pred_fallthru
      _
    %p983 = scmp.le.s32.totalorder 2, %s14
    // Predicated region
    $region57: #{tpu_custom_call.1} parent=5 // pred_check
      %p984 = pneg %p983
    $region58: #{tpu_custom_call.1} parent=5 // pred_check_branch
      %986 = sbr.rel (%p984) target = $region60
    $region59: #{tpu_custom_call.1} parent=5 // pred_region
      %s987 = ssub.s32 %s14, 2
      // Predicated region
      $region61: #{tpu_custom_call.1} parent=59 // pred_check
        %p988 = pneg %p221
      $region62: #{tpu_custom_call.1} parent=59 // pred_check_branch
        %990 = sbr.rel (%p988) target = $region64
      $region63: #{tpu_custom_call.1} parent=59 // pred_region
        %p991 = scmp.lt.s32.totalorder %s20, 1
        %s992 = scalar_select %p991, %s20, 1
        %s993 = smul.addr %s992, 32
        %s994 = smul.addr %s993, 4
        %s995 = scalar_lea.vmem %s8, %s994
      $region64: #{tpu_custom_call.1} parent=59 // pred_fallthru
        _
    $region60: #{tpu_custom_call.1} parent=5 // pred_fallthru
      _
  $region6: #{tpu_custom_call.1} parent=0 // loop_footer
    %s18 = sadd.s32 1, %s14
  $region7: #{tpu_custom_call.1} parent=0 // loop_footer_branch
    %13 = sbr.rel target = $region3
  $region8: #{tpu_custom_call.1} parent=0 // loop_exit
    _

</llo_original>
